<compile_context>
chip_gen: v7x
topology: tpu7x:2x2x1
jax: 0.10.0
libtpu: 0.0.40
codegen_flags: <defaults>
</compile_context>

<pallas_src>
import functools

import jax
import jax.numpy as jnp
from jax import lax
from jax.experimental import pallas as pl
from jax.experimental.pallas import tpu as pltpu


def _ltm_head_kernel(m_ref, inp_ref, wkqv_ref, out_ref, stats_ref, *,
                     n_memory, block_size, head_size, lq_add, decay):
    """One batch block (BB batch elements) per grid step.

    m_ref    : (BB, M, E)   memory + positional embedding
    inp_ref  : (BB, T, E)   current block input
    wkqv_ref : (E, 3H)      fused [Wk | Wq*scale | Wv], bf16
    out_ref  : (BB, T, H)   wei @ v
    stats_ref: (BB, 1, W)   lanes 0..M-1 = rank delta, lane M = per-batch loss
    """
    M, T, H = n_memory, block_size, head_size
    MT = M + T
    BB = m_ref.shape[0]
    E = m_ref.shape[2]

    # Concatenate memory rows and inp rows once, in VMEM (both multiples of 8).
    x = jnp.concatenate([m_ref[...], inp_ref[...]], axis=1)        # (BB, MT, E) f32

    # Single fused projection on the MXU: fold batch+seq rows, bf16 in, f32 acc.
    x2 = x.reshape(BB * MT, E).astype(jnp.bfloat16)
    kqv = jnp.dot(x2, wkqv_ref[...],
                  preferred_element_type=jnp.float32)              # (BB*MT, 3H) f32
    kqv = kqv.reshape(BB, MT, 3 * H).astype(jnp.bfloat16)          # single cast
    k = kqv[:, :, 0 * H:1 * H]                                     # (BB, MT, H)
    q = kqv[:, M:, 1 * H:2 * H]                                    # (BB, T, H)  queries of inp rows
    v = kqv[:, :, 2 * H:3 * H]                                     # (BB, MT, H)

    # Scores: contraction on the shared head axis (no explicit k transpose).
    # (M+T)^-0.5 is already folded into Wq, so just square.
    s = lax.dot_general(
        q, k, dimension_numbers=(((2,), (2,)), ((0,), (0,))),
        preferred_element_type=jnp.float32)                        # (BB, T, MT)
    wei = s * s
    # NOTE: like the PyTorch reference, an all-zero score row yields 0/0 here.
    rowmax = jnp.max(wei, axis=-1, keepdims=True)                  # (BB, T, 1)
    wei = wei * pl.reciprocal(rowmax, approx=True)

    out = lax.dot_general(
        wei.astype(jnp.bfloat16), v,
        dimension_numbers=(((2,), (1,)), ((0,), (0,))),
        preferred_element_type=jnp.float32)                        # (BB, T, H)
    out_ref[...] = out.astype(out_ref.dtype)

    # Column sums once; rank delta + log-loss packed into a lane-dense slab.
    colsum = jnp.sum(wei, axis=1, keepdims=True)                   # (BB, 1, MT)
    mean_wei = jnp.mean(colsum, axis=2, keepdims=True)             # (BB, 1, 1)
    rank_delta = (colsum[:, :, :M] * pl.reciprocal(mean_wei, approx=True)
                  - 1.0 - decay)                                   # (BB, 1, M)
    loss_b = jnp.sum(jnp.sum(jnp.log(wei + lq_add), axis=2, keepdims=True),
                     axis=1, keepdims=True)                        # (BB, 1, 1)

    stats_ref[...] = jnp.zeros_like(stats_ref)
    stats_ref[:, :, 0:M] = rank_delta
    stats_ref[:, :, M:M + 1] = loss_b


def ltm_head_forward(params, state, block_pos_list, inp, *, lq_add, decay):
    """Faithful re-implementation of LTMHead.forward (mask=None path).

    Returns ((wei @ v, qt_loss), new_state) where
    new_state = (memory, memory_block_dist, memory_rank).
    """
    wk, wq, wv, pos_table = (params["wk"], params["wq"],
                             params["wv"], params["pos_table"])
    memory, memory_block_dist, memory_rank = state

    B, T, E = inp.shape
    M = memory.shape[1]
    H = wk.shape[1]
    MT = M + T
    scale = MT ** (-0.5)

    # --- buffer reset for block_pos == 0 (per-batch) ---
    reset = (block_pos_list == 0)
    memory = jnp.where(reset[:, None, None], 0.0, memory)
    memory_block_dist = jnp.where(reset[:, None],
                                  jnp.zeros_like(memory_block_dist),
                                  memory_block_dist)

    memory_block_dist = memory_block_dist + 1
    m_pos_ix = jnp.log2(memory_block_dist.astype(jnp.float32)).astype(jnp.int32)
    m_pos_emb = jnp.take(pos_table, m_pos_ix, axis=0)              # (B, M, E)
    m_with_emb = memory + m_pos_emb                                # (B, M, E)

    # Fused K/Q/V weight; bf16 operands (f32 accum in-kernel) halve weight DMA
    # bytes. Fold the (M+T)^-0.5 score scale into Wq so the kernel just squares
    # the raw dot products (saves a full (T, M+T) VPU multiply per batch elem).
    wkqv = jnp.concatenate([wk, wq * scale, wv], axis=1).astype(jnp.bfloat16)

    # Batch block: as many batch elements per grid step as possible (<= 8).
    BB = next(d for d in (8, 4, 2, 1) if B % d == 0)
    STATS_W = max(128, ((M + 1 + 127) // 128) * 128)               # lane-dense stats width

    kernel = functools.partial(_ltm_head_kernel, n_memory=M, block_size=T,
                               head_size=H, lq_add=lq_add, decay=decay)

    out, stats = pl.pallas_call(
        kernel,
        out_shape=(
            jax.ShapeDtypeStruct((B, T, H), jnp.float32),
            jax.ShapeDtypeStruct((B, 1, STATS_W), jnp.float32),
        ),
        grid_spec=pltpu.PrefetchScalarGridSpec(
            num_scalar_prefetch=0,
            grid=(B // BB,),
            in_specs=[
                pl.BlockSpec((BB, M, E), lambda b: (b, 0, 0)),     # memory + pos emb
                pl.BlockSpec((BB, T, E), lambda b: (b, 0, 0)),     # inp
                pl.BlockSpec((E, 3 * H), lambda b: (0, 0)),        # fused Wkqv
            ],
            out_specs=[
                pl.BlockSpec((BB, T, H), lambda b: (b, 0, 0)),
                pl.BlockSpec((BB, 1, STATS_W), lambda b: (b, 0, 0)),
            ],
        ),
        compiler_params=pltpu.CompilerParams(
            dimension_semantics=("parallel",),       # disjoint batch blocks -> v7x 2-TC shard
            vmem_limit_bytes=32 * 1024 * 1024),
    )(m_with_emb, inp, wkqv)

    rank_delta = stats[:, 0, :M]                                   # (B, M)
    qt_loss = jnp.sum(stats[:, 0, M])

    # --- memory / rank state update (glue; sort has no clean Pallas equivalent) ---
    memory_rank = memory_rank + rank_delta
    mr_idx = jnp.argsort(-memory_rank, axis=1)                     # descending sort
    mem_sorted = jnp.take_along_axis(memory, mr_idx[:, :, None], axis=1)
    dist_sorted = jnp.take_along_axis(memory_block_dist, mr_idx, axis=1)
    rank_sorted = jnp.take_along_axis(memory_rank, mr_idx, axis=1)

    replace_size = min(T, M)
    memory = mem_sorted.at[:, -replace_size:].set(inp[:, -replace_size:])
    memory_block_dist = dist_sorted.at[:, -replace_size:].set(0)
    memory_rank = rank_sorted.at[:, -replace_size:].set(1.0)

    new_state = (memory, memory_block_dist, memory_rank)
    # TODO(synk): mask path (`wei.masked_fill(self.mask, -inf)`) is not implemented
    # (the reference module itself references an undefined `self.mask`).
    return (out, qt_loss), new_state


if __name__ == "__main__":
    B, T, E, H, M = 2, 8, 32, 16, 8     # batch, block_size, n_embd, head_size, n_memory
    n_pos = 16                          # positional-embedding table rows
    lq_add, decay = 1e-3, 0.01

    key = jax.random.PRNGKey(0)
    k1, k2, k3, k4, k5 = jax.random.split(key, 5)
    params = {
        "wk": jax.random.normal(k1, (E, H), jnp.float32) * (1.0 / E ** 0.5),
        "wq": jax.random.normal(k2, (E, H), jnp.float32) * (1.0 / E ** 0.5),
        "wv": jax.random.normal(k3, (E, H), jnp.float32) * (1.0 / E ** 0.5),
        "pos_table": jax.random.normal(k4, (n_pos, E), jnp.float32) * 0.02,
    }
    state = (
        jnp.zeros((B, M, E), jnp.float32),   # memory
        jnp.zeros((B, M), jnp.int32),        # memory_block_dist
        jnp.zeros((B, M), jnp.float32),      # memory_rank
    )
    inp = jax.random.normal(k5, (B, T, E), jnp.float32)
    block_pos_list = jnp.array([0, 1], dtype=jnp.int32)

    fwd = jax.jit(functools.partial(ltm_head_forward, lq_add=lq_add, decay=decay))
    (out, qt_loss), new_state = fwd(params, state, block_pos_list, inp)
    jax.block_until_ready((out, qt_loss, new_state))

    assert out.shape == (B, T, H)
    assert qt_loss.shape == ()
    assert new_state[0].shape == (B, M, E)
    assert bool(jnp.isfinite(out).all()) and bool(jnp.isfinite(qt_loss))
    print("KERNEL_OK")
</pallas_src>

<mosaic_0001>
module attributes {stable_mosaic.version = 11 : i64} {
  func.func @_ltm_head_kernel(%arg0: i32, %arg1: memref<2x8x32xf32, #tpu.memory_space<vmem>>, %arg2: memref<2x8x32xf32, #tpu.memory_space<vmem>>, %arg3: memref<32x48xbf16, #tpu.memory_space<vmem>>, %arg4: memref<2x8x16xf32, #tpu.memory_space<vmem>>, %arg5: memref<2x1x128xf32, #tpu.memory_space<vmem>>) attributes {dimension_semantics = [#tpu.dimension_semantics<parallel>], iteration_bounds = array<i64: 1>, scalar_prefetch = 0 : i64, scratch_operands = 0 : i64, tpu.core_type = #tpu.core_type<tc>, window_params = [{transform_indices = @transform_0, window_bounds = array<i64: 2, 8, 32>}, {transform_indices = @transform_1, window_bounds = array<i64: 2, 8, 32>}, {pipeline_mode = #tpu.pipeline_mode<synchronous>, transform_indices = @transform_2, window_bounds = array<i64: 32, 48>}, {transform_indices = @transform_3, window_bounds = array<i64: 2, 8, 16>}, {transform_indices = @transform_4, window_bounds = array<i64: 2, 1, 128>}]} {
    %c0 = arith.constant 0 : index
    %c0_0 = arith.constant 0 : index
    %c0_1 = arith.constant 0 : index
    %0 = vector.load %arg1[%c0, %c0_0, %c0_1] : memref<2x8x32xf32, #tpu.memory_space<vmem>>, vector<2x8x32xf32>
    %c0_2 = arith.constant 0 : index
    %c0_3 = arith.constant 0 : index
    %c0_4 = arith.constant 0 : index
    %1 = vector.load %arg2[%c0_2, %c0_3, %c0_4] : memref<2x8x32xf32, #tpu.memory_space<vmem>>, vector<2x8x32xf32>
    %2 = tpu.concatenate %0, %1 in 1 : vector<2x8x32xf32>, vector<2x8x32xf32> -> vector<2x16x32xf32>
    %3 = vector.shape_cast %2 : vector<2x16x32xf32> to vector<32x32xf32>
    %4 = arith.truncf %3 : vector<32x32xf32> to vector<32x32xbf16>
    %c0_5 = arith.constant 0 : index
    %c0_6 = arith.constant 0 : index
    %5 = vector.load %arg3[%c0_5, %c0_6] : memref<32x48xbf16, #tpu.memory_space<vmem>>, vector<32x48xbf16>
    %cst = arith.constant dense<0.000000e+00> : vector<32x48xf32>
    %6 = tpu.matmul %4, %5, %cst {dimension_numbers = #tpu.dot_dimension_numbers<[1], [0], [0], [1], [0, 0, 1, 1], [], []>} : vector<32x32xbf16>, vector<32x48xbf16>, vector<32x48xf32> -> vector<32x48xf32>
    %7 = vector.shape_cast %6 : vector<32x48xf32> to vector<2x16x48xf32>
    %8 = arith.truncf %7 : vector<2x16x48xf32> to vector<2x16x48xbf16>
    %9 = vector.extract_strided_slice %8 {offsets = [0, 0, 0], sizes = [2, 16, 16], strides = [1, 1, 1]} : vector<2x16x48xbf16> to vector<2x16x16xbf16>
    %10 = vector.extract_strided_slice %8 {offsets = [0, 8, 16], sizes = [2, 8, 16], strides = [1, 1, 1]} : vector<2x16x48xbf16> to vector<2x8x16xbf16>
    %11 = vector.extract_strided_slice %8 {offsets = [0, 0, 32], sizes = [2, 16, 16], strides = [1, 1, 1]} : vector<2x16x48xbf16> to vector<2x16x16xbf16>
    %cst_7 = arith.constant dense<0.000000e+00> : vector<2x8x16xf32>
    %12 = tpu.matmul %10, %9, %cst_7 {dimension_numbers = #tpu.dot_dimension_numbers<[2], [2], [1], [1], [0, 0, 0, 1, 1, 1], [0], [0]>} : vector<2x8x16xbf16>, vector<2x16x16xbf16>, vector<2x8x16xf32> -> vector<2x8x16xf32>
    %13 = arith.mulf %12, %12 : vector<2x8x16xf32>
    %cst_8 = arith.constant dense<0xFF800000> : vector<2x8xf32>
    %14 = vector.multi_reduction <maximumf>, %13, %cst_8 [2] : vector<2x8x16xf32> to vector<2x8xf32>
    %15 = vector.shape_cast %14 : vector<2x8xf32> to vector<2x8x1xf32>
    %16 = tpu.reciprocal %15 {approx = true} : vector<2x8x1xf32> -> vector<2x8x1xf32>
    %17 = vector.broadcast %16 : vector<2x8x1xf32> to vector<2x8x16xf32>
    %18 = arith.mulf %13, %17 : vector<2x8x16xf32>
    %19 = arith.truncf %18 : vector<2x8x16xf32> to vector<2x8x16xbf16>
    %cst_9 = arith.constant dense<0.000000e+00> : vector<2x8x16xf32>
    %20 = tpu.matmul %19, %11, %cst_9 {dimension_numbers = #tpu.dot_dimension_numbers<[2], [1], [1], [2], [0, 0, 0, 1, 1, 2], [0], [0]>} : vector<2x8x16xbf16>, vector<2x16x16xbf16>, vector<2x8x16xf32> -> vector<2x8x16xf32>
    %c0_10 = arith.constant 0 : index
    %c0_11 = arith.constant 0 : index
    %c0_12 = arith.constant 0 : index
    %21 = vector.load %arg4[%c0_10, %c0_11, %c0_12] : memref<2x8x16xf32, #tpu.memory_space<vmem>>, vector<2x8x16xf32>
    tpu.vector_store %arg4[%c0_10, %c0_11, %c0_12], %20 {strides = array<i32>} : memref<2x8x16xf32, #tpu.memory_space<vmem>>, vector<2x8x16xf32>,
    %cst_13 = arith.constant dense<0.000000e+00> : vector<2x16xf32>
    %22 = vector.multi_reduction <add>, %18, %cst_13 [1] : vector<2x8x16xf32> to vector<2x16xf32>
    %23 = vector.shape_cast %22 : vector<2x16xf32> to vector<2x1x16xf32>
    %cst_14 = arith.constant dense<0.000000e+00> : vector<2x1xf32>
    %24 = vector.multi_reduction <add>, %23, %cst_14 [2] : vector<2x1x16xf32> to vector<2x1xf32>
    %25 = vector.shape_cast %24 : vector<2x1xf32> to vector<2x1x1xf32>
    %cst_15 = arith.constant 1.600000e+01 : f32
    %26 = vector.broadcast %cst_15 : f32 to vector<2x1x1xf32>
    %27 = arith.divf %25, %26 : vector<2x1x1xf32>
    %28 = vector.extract_strided_slice %23 {offsets = [0, 0, 0], sizes = [2, 1, 8], strides = [1, 1, 1]} : vector<2x1x16xf32> to vector<2x1x8xf32>
    %29 = tpu.reciprocal %27 {approx = true} : vector<2x1x1xf32> -> vector<2x1x1xf32>
    %30 = vector.broadcast %29 : vector<2x1x1xf32> to vector<2x1x8xf32>
    %31 = arith.mulf %28, %30 : vector<2x1x8xf32>
    %cst_16 = arith.constant 1.000000e+00 : f32
    %32 = vector.broadcast %cst_16 : f32 to vector<2x1x8xf32>
    %33 = arith.subf %31, %32 : vector<2x1x8xf32>
    %cst_17 = arith.constant 0.00999999977 : f32
    %34 = vector.broadcast %cst_17 : f32 to vector<2x1x8xf32>
    %35 = arith.subf %33, %34 : vector<2x1x8xf32>
    %cst_18 = arith.constant 1.000000e-03 : f32
    %36 = vector.broadcast %cst_18 : f32 to vector<2x8x16xf32>
    %37 = arith.addf %18, %36 : vector<2x8x16xf32>
    %38 = math.log %37 : vector<2x8x16xf32>
    %cst_19 = arith.constant dense<0.000000e+00> : vector<2x8xf32>
    %39 = vector.multi_reduction <add>, %38, %cst_19 [2] : vector<2x8x16xf32> to vector<2x8xf32>
    %40 = vector.shape_cast %39 : vector<2x8xf32> to vector<2x8x1xf32>
    %cst_20 = arith.constant dense<0.000000e+00> : vector<2x1xf32>
    %41 = vector.multi_reduction <add>, %40, %cst_20 [1] : vector<2x8x1xf32> to vector<2x1xf32>
    %42 = vector.shape_cast %41 : vector<2x1xf32> to vector<2x1x1xf32>
    %cst_21 = arith.constant 0.000000e+00 : f32
    %43 = vector.broadcast %cst_21 : f32 to vector<2x1x128xf32>
    %c0_22 = arith.constant 0 : index
    %c0_23 = arith.constant 0 : index
    %c0_24 = arith.constant 0 : index
    %44 = vector.load %arg5[%c0_22, %c0_23, %c0_24] : memref<2x1x128xf32, #tpu.memory_space<vmem>>, vector<2x1x128xf32>
    tpu.vector_store %arg5[%c0_22, %c0_23, %c0_24], %43 {strides = array<i32>} : memref<2x1x128xf32, #tpu.memory_space<vmem>>, vector<2x1x128xf32>,
    %c0_25 = arith.constant 0 : index
    %c0_26 = arith.constant 0 : index
    %c0_27 = arith.constant 0 : index
    %45 = vector.load %arg5[%c0_25, %c0_26, %c0_27] : memref<2x1x128xf32, #tpu.memory_space<vmem>>, vector<2x1x8xf32>
    tpu.vector_store %arg5[%c0_25, %c0_26, %c0_27], %35 {strides = array<i32>} : memref<2x1x128xf32, #tpu.memory_space<vmem>>, vector<2x1x8xf32>,
    %c0_28 = arith.constant 0 : index
    %c0_29 = arith.constant 0 : index
    %c8 = arith.constant 8 : index
    %46 = vector.load %arg5[%c0_28, %c0_29, %c8] : memref<2x1x128xf32, #tpu.memory_space<vmem>>, vector<2x1x1xf32>
    tpu.vector_store %arg5[%c0_28, %c0_29, %c8], %42 {strides = array<i32>} : memref<2x1x128xf32, #tpu.memory_space<vmem>>, vector<2x1x1xf32>,
    return
  }
  func.func @transform_0(%arg0: i32) -> (i32, i32, i32) {
    %c0_i32 = arith.constant 0 : i32
    %c0_i32_0 = arith.constant 0 : i32
    %c0_i32_1 = arith.constant 0 : i32
    return %arg0, %c0_i32, %c0_i32_0 : i32, i32, i32
  }
  func.func @transform_1(%arg0: i32) -> (i32, i32, i32) {
    %c0_i32 = arith.constant 0 : i32
    %c0_i32_0 = arith.constant 0 : i32
    %c0_i32_1 = arith.constant 0 : i32
    return %arg0, %c0_i32, %c0_i32_0 : i32, i32, i32
  }
  func.func @transform_2(%arg0: i32) -> (i32, i32) {
    %c0_i32 = arith.constant 0 : i32
    %c0_i32_0 = arith.constant 0 : i32
    %c0_i32_1 = arith.constant 0 : i32
    return %c0_i32, %c0_i32_0 : i32, i32
  }
  func.func @transform_3(%arg0: i32) -> (i32, i32, i32) {
    %c0_i32 = arith.constant 0 : i32
    %c0_i32_0 = arith.constant 0 : i32
    %c0_i32_1 = arith.constant 0 : i32
    return %arg0, %c0_i32, %c0_i32_0 : i32, i32, i32
  }
  func.func @transform_4(%arg0: i32) -> (i32, i32, i32) {
    %c0_i32 = arith.constant 0 : i32
    %c0_i32_0 = arith.constant 0 : i32
    %c0_i32_1 = arith.constant 0 : i32
    return %arg0, %c0_i32, %c0_i32_0 : i32, i32, i32
  }
}

</mosaic_0001>

<llo_original>
// kernel: ltm_head_forward.1
$region0: #{ltm_head_forward.1}
  #allocation0 [shape = 'u32[]', space=smem, size = 0x4, offset = 0x4, fixed_abs, tag = 'smem constant byte address 0x4 - core index']
  #allocation1 [shape = 'u32[144,128]{1,0:T(1,128)}', space=vmem, size = 0x12000, scoped, tag = 'internal scratch']
  %s0 = inlined_call_operand.vmem [shape: f32[2,8,32], index: 0, kind: input, shape index: {}]
  %s1 = inlined_call_operand.vmem [shape: f32[2,8,32], index: 1, kind: input, shape index: {}]
  %s2 = inlined_call_operand.vmem [shape: bf16[32,48], index: 2, kind: input, shape index: {}]
  %s3 = inlined_call_operand.hbm [shape: f32[2,8,16], index: 3, kind: output, shape index: {0}]
  %s4 = inlined_call_operand.vmem [shape: f32[2,1,128], index: 4, kind: output, shape index: {1}]
  %5 = xla_tuple %s3, %s4
  %s6 = sld [smem:[#allocation0]]
  $region30: #{ltm_head_forward.1} parent=0
    _
  %s8 = ssub.s32 1, %s6
  %s9 = scalar_select 0, %s8, %s6
  $region1: #{ltm_head_forward.1} parent=0
    #allocation2 [shape = 'u8[8192]{0}', space=vmem, size = 0x2000, scoped, tag = 'output window, operand 0, single buffered']
    #allocation3 [shape = 's32[1]{0}', space=sflag, size = 0x4, scoped, tag = 'scoped memory for ltm_head_forward.1']
    %10 = vsyncpa [#allocation3], 0
    // Predicated region
    $region2: #{ltm_head_forward.1} parent=1 // pred_check
      _
    $region3: #{ltm_head_forward.1} parent=1 // pred_check_branch
      %12 = sbr.rel (0) target = $region5
    $region4: #{ltm_head_forward.1} parent=1 // pred_region
      _
    $region5: #{ltm_head_forward.1} parent=1 // pred_fallthru
      _
    // Predicated region
    $region6: #{ltm_head_forward.1} parent=1 // pred_check
      _
    $region7: #{ltm_head_forward.1} parent=1 // pred_check_branch
      %14 = sbr.rel (0) target = $region9
    $region8: #{ltm_head_forward.1} parent=1 // pred_region
      _
    $region9: #{ltm_head_forward.1} parent=1 // pred_fallthru
      _
    // Predicated region
    $region10: #{ltm_head_forward.1} parent=1 // pred_check
      _
    $region11: #{ltm_head_forward.1} parent=1 // pred_check_branch
      %16 = sbr.rel (0) target = $region13
    $region12: #{ltm_head_forward.1} parent=1 // pred_region
      _
    $region13: #{ltm_head_forward.1} parent=1 // pred_fallthru
      _
    %v18 = vld [vmem:[%s0] sm:$0xff]
    %v19 = vld [vmem:[%s0 + $0x8] sm:$0xff]
    %v20 = vld [vmem:[%s1] sm:$0xff]
    %v21 = vld [vmem:[%s1 + $0x8] sm:$0xff]
    %v22 = vpack.c.bf16 %v20, %v18
    %v23 = vpack.c.bf16 %v21, %v19
    %v24 = vld [vmem:[%s2] sm:$0xf]
    %v25 = vld [vmem:[%s2 + $0x4] sm:$0xf]
    %v26 = vld [vmem:[%s2 + $0x8] sm:$0xf]
    %v27 = vld [vmem:[%s2 + $0xc] sm:$0xf]
    %v32 = vunpack.c.l.b16 %v24
    %v33 = vunpack.c.l.b16 %v25
    %v34 = vunpack.c.l.b16 %v26
    %v35 = vunpack.c.l.b16 %v27
    %v36 = vpack.c.b16 %v33, %v32
    %v37 = vpack.c.b16 %v35, %v34
    %vm40 = vcmask 261120
    %v42 = vsel %vm40, %v22, 0
    %v45 = vsel %vm40, %v23, 0
    %47 = vmatprep.subr.bf16.mxu0 0
    %48 = vmatpush1.bf16.msra.mxu0 %v36
    %49 = vmatprep.subr.bf16.mxu0 0
    %50 = vmatpush1.bf16.msra.mxu0 %v37
    %51 = vmatprep.subr.bf16.mxu0 0
    %52 = vmatpush1.bf16.msra.mxu0 0
    %53 = vmatprep.subr.bf16.mxu0 0
    %54 = vmatpush1.bf16.msra.mxu0 0
    %55 = vmatprep.subr.bf16.mxu0 0
    %56 = vmatpush1.bf16.msra.mxu0 0
    %57 = vmatprep.subr.bf16.mxu0 0
    %58 = vmatpush1.bf16.msra.mxu0 0
    %59 = vmatprep.subr.bf16.mxu0 0
    %60 = vmatpush1.bf16.msra.mxu0 0
    %61 = vmatprep.subr.bf16.mxu0 0
    %62 = vmatpush1.bf16.msra.mxu0 0
    %63 = vmatprep.subr.bf16.mxu0 0
    %64 = vmatpush1.bf16.msra.mxu0 0
    %65 = vmatprep.subr.bf16.mxu0 0
    %66 = vmatpush1.bf16.msra.mxu0 0
    %67 = vmatprep.subr.bf16.mxu0 0
    %68 = vmatpush1.bf16.msra.mxu0 0
    %69 = vmatprep.subr.bf16.mxu0 0
    %70 = vmatpush1.bf16.msra.mxu0 0
    %71 = vmatprep.subr.bf16.mxu0 0
    %72 = vmatpush1.bf16.msra.mxu0 0
    %73 = vmatprep.subr.bf16.mxu0 0
    %74 = vmatpush1.bf16.msra.mxu0 0
    %75 = vmatprep.subr.bf16.mxu0 0
    %76 = vmatpush1.bf16.msra.mxu0 0
    %77 = vmatprep.subr.bf16.mxu0 0
    %78 = vmatpush1.bf16.msra.mxu0 0
    %79 = vmatprep.mubr.bf16.mxu0 0
    %80 = vmatmul.mubr.bf16.gmra.mrb[0].mxu0 %v42
    %v81 = vpop.f32.mrb[0].mxu0
    %v82 = vadd.f32 0.0, %v81
    %v83 = vpop.f32.mrb[0].mxu0
    %v84 = vpop.f32.mrb[0].mxu0
    %v85 = vadd.f32 0.0, %v84
    %v86 = vpop.f32.mrb[0].mxu0
    %87 = vmatprep.mubr.bf16.mxu0 0
    %88 = vmatmul.mubr.bf16.gmra.mrb[0].mxu0 %v45
    %v89 = vpop.f32.mrb[0].mxu0
    %v90 = vadd.f32 0.0, %v89
    %v91 = vpop.f32.mrb[0].mxu0
    %v92 = vpop.f32.mrb[0].mxu0
    %v93 = vadd.f32 0.0, %v92
    %v94 = vpop.f32.mrb[0].mxu0
    %95 = vdwg.mxu0
    %v96 = vpack.c.bf16 %v85, %v82
    %v97 = vpack.c.bf16 %v93, %v90
    %v99 = vrot.slane %v96, 4
    %100 = vrot.lane.b32.xlu0 %v99, 112
    %v101 = vpop.permute.xlu0 %100
    %vm102 = vcmask 130048
    %v104 = vsel %vm102, %v101, 0
    %v107 = vsel %vm102, %v96, 0
    %109 = vmatprep.subr.bf16.mxu0 0
    %110 = vmatpush1.bf16.xpose.msra.mxu0 %v107
    %111 = vmatprep.subr.bf16.mxu0 0
    %112 = vmatpush1.bf16.xpose.msra.mxu0 0
    %113 = vmatprep.subr.bf16.mxu0 0
    %114 = vmatpush1.bf16.xpose.msra.mxu0 0
    %115 = vmatprep.subr.bf16.mxu0 0
    %116 = vmatpush1.bf16.xpose.msra.mxu0 0
    %117 = vmatprep.subr.bf16.mxu0 0
    %118 = vmatpush1.bf16.xpose.msra.mxu0 0
    %119 = vmatprep.subr.bf16.mxu0 0
    %120 = vmatpush1.bf16.xpose.msra.mxu0 0
    %121 = vmatprep.subr.bf16.mxu0 0
    %122 = vmatpush1.bf16.xpose.msra.mxu0 0
    %123 = vmatprep.subr.bf16.mxu0 0
    %124 = vmatpush1.bf16.xpose.msra.mxu0 0
    %125 = vmatprep.subr.bf16.mxu0 0
    %126 = vmatpush1.bf16.xpose.msra.mxu0 0
    %127 = vmatprep.subr.bf16.mxu0 0
    %128 = vmatpush1.bf16.xpose.msra.mxu0 0
    %129 = vmatprep.subr.bf16.mxu0 0
    %130 = vmatpush1.bf16.xpose.msra.mxu0 0
    %131 = vmatprep.subr.bf16.mxu0 0
    %132 = vmatpush1.bf16.xpose.msra.mxu0 0
    %133 = vmatprep.subr.bf16.mxu0 0
    %134 = vmatpush1.bf16.xpose.msra.mxu0 0
    %135 = vmatprep.subr.bf16.mxu0 0
    %136 = vmatpush1.bf16.xpose.msra.mxu0 0
    %137 = vmatprep.subr.bf16.mxu0 0
    %138 = vmatpush1.bf16.xpose.msra.mxu0 0
    %139 = vmatprep.subr.bf16.mxu0 0
    %140 = vmatpush1.bf16.xpose.msra.mxu0 0
    %141 = vmatprep.mubr.bf16.mxu0 0
    %142 = vmatmul.mubr.bf16.gmra.mrb[0].mxu0 %v104
    %v143 = vpop.f32.mrb[0].mxu0
    %v144 = vadd.f32 0.0, %v143
    %v145 = vpop.f32.mrb[0].mxu0
    %v146 = vpop.f32.mrb[0].mxu0
    %v147 = vpop.f32.mrb[0].mxu0
    %148 = vdwg.mxu0
    %v150 = vrot.slane %v97, 4
    %151 = vrot.lane.b32.xlu0 %v150, 112
    %v152 = vpop.permute.xlu0 %151
    %v154 = vsel %vm102, %v152, 0
    %v157 = vsel %vm102, %v97, 0
    %159 = vmatprep.subr.bf16.mxu0 0
    %160 = vmatpush1.bf16.xpose.msra.mxu0 %v157
    %161 = vmatprep.subr.bf16.mxu0 0
    %162 = vmatpush1.bf16.xpose.msra.mxu0 0
    %163 = vmatprep.subr.bf16.mxu0 0
    %164 = vmatpush1.bf16.xpose.msra.mxu0 0
    %165 = vmatprep.subr.bf16.mxu0 0
    %166 = vmatpush1.bf16.xpose.msra.mxu0 0
    %167 = vmatprep.subr.bf16.mxu0 0
    %168 = vmatpush1.bf16.xpose.msra.mxu0 0
    %169 = vmatprep.subr.bf16.mxu0 0
    %170 = vmatpush1.bf16.xpose.msra.mxu0 0
    %171 = vmatprep.subr.bf16.mxu0 0
    %172 = vmatpush1.bf16.xpose.msra.mxu0 0
    %173 = vmatprep.subr.bf16.mxu0 0
    %174 = vmatpush1.bf16.xpose.msra.mxu0 0
    %175 = vmatprep.subr.bf16.mxu0 0
    %176 = vmatpush1.bf16.xpose.msra.mxu0 0
    %177 = vmatprep.subr.bf16.mxu0 0
    %178 = vmatpush1.bf16.xpose.msra.mxu0 0
    %179 = vmatprep.subr.bf16.mxu0 0
    %180 = vmatpush1.bf16.xpose.msra.mxu0 0
    %181 = vmatprep.subr.bf16.mxu0 0
    %182 = vmatpush1.bf16.xpose.msra.mxu0 0
    %183 = vmatprep.subr.bf16.mxu0 0
    %184 = vmatpush1.bf16.xpose.msra.mxu0 0
    %185 = vmatprep.subr.bf16.mxu0 0
    %186 = vmatpush1.bf16.xpose.msra.mxu0 0
    %187 = vmatprep.subr.bf16.mxu0 0
    %188 = vmatpush1.bf16.xpose.msra.mxu0 0
    %189 = vmatprep.subr.bf16.mxu0 0
    %190 = vmatpush1.bf16.xpose.msra.mxu0 0
    %191 = vmatprep.mubr.bf16.mxu0 0
    %192 = vmatmul.mubr.bf16.gmra.mrb[0].mxu0 %v154
    %v193 = vpop.f32.mrb[0].mxu0
    %v194 = vadd.f32 0.0, %v193
    %v195 = vpop.f32.mrb[0].mxu0
    %v196 = vpop.f32.mrb[0].mxu0
    %v197 = vpop.f32.mrb[0].mxu0
    %198 = vdwg.mxu0
    %v199 = vmul.f32 %v144, %v144
    %v200 = vmul.f32 %v194, %v194
    %v201 = vsel %vm102, %v199, -inf
    %202 = vmax.xlane.f32.xlu0 %v201
    %v203 = vpop.xlane.xlu0 %202
    %v204 = vsel %vm102, %v200, -inf
    %205 = vmax.xlane.f32.xlu0 %v204
    %v206 = vpop.xlane.xlu0 %205
    %v207 = vrcp.pop %v203
    %v208 = vrcp.pop %v206
    %v209 = vmul.f32 %v199, %v207
    %v210 = vmul.f32 %v200, %v208
    %v211 = vpack.c.bf16 %v209, %v209
    %v212 = vpack.c.bf16 %v210, %v210
    %213 = vrot.lane.b32.xlu0 %v96, 96
    %v214 = vpop.permute.xlu0 %213
    %v217 = vsel %vm102, %v211, 0
    %219 = vmatprep.subr.bf16.mxu0 0
    %220 = vmatpush1.bf16.msra.mxu0 %v214
    %221 = vmatprep.subr.bf16.mxu0 0
    %222 = vmatpush1.bf16.msra.mxu0 0
    %223 = vmatprep.subr.bf16.mxu0 0
    %224 = vmatpush1.bf16.msra.mxu0 0
    %225 = vmatprep.subr.bf16.mxu0 0
    %226 = vmatpush1.bf16.msra.mxu0 0
    %227 = vmatprep.subr.bf16.mxu0 0
    %228 = vmatpush1.bf16.msra.mxu0 0
    %229 = vmatprep.subr.bf16.mxu0 0
    %230 = vmatpush1.bf16.msra.mxu0 0
    %231 = vmatprep.subr.bf16.mxu0 0
    %232 = vmatpush1.bf16.msra.mxu0 0
    %233 = vmatprep.subr.bf16.mxu0 0
    %234 = vmatpush1.bf16.msra.mxu0 0
    %235 = vmatprep.subr.bf16.mxu0 0
    %236 = vmatpush1.bf16.msra.mxu0 0
    %237 = vmatprep.subr.bf16.mxu0 0
    %238 = vmatpush1.bf16.msra.mxu0 0
    %239 = vmatprep.subr.bf16.mxu0 0
    %240 = vmatpush1.bf16.msra.mxu0 0
    %241 = vmatprep.subr.bf16.mxu0 0
    %242 = vmatpush1.bf16.msra.mxu0 0
    %243 = vmatprep.subr.bf16.mxu0 0
    %244 = vmatpush1.bf16.msra.mxu0 0
    %245 = vmatprep.subr.bf16.mxu0 0
    %246 = vmatpush1.bf16.msra.mxu0 0
    %247 = vmatprep.subr.bf16.mxu0 0
    %248 = vmatpush1.bf16.msra.mxu0 0
    %249 = vmatprep.subr.bf16.mxu0 0
    %250 = vmatpush1.bf16.msra.mxu0 0
    %251 = vmatprep.mubr.bf16.mxu0 0
    %252 = vmatmul.mubr.bf16.gmra.mrb[0].mxu0 %v217
    %v253 = vpop.f32.mrb[0].mxu0
    %v254 = vadd.f32 0.0, %v253
    %v255 = vpop.f32.mrb[0].mxu0
    %v256 = vpop.f32.mrb[0].mxu0
    %v257 = vpop.f32.mrb[0].mxu0
    %258 = vdwg.mxu0
    %259 = vrot.lane.b32.xlu0 %v97, 96
    %v260 = vpop.permute.xlu0 %259
    %v263 = vsel %vm102, %v212, 0
    %265 = vmatprep.subr.bf16.mxu0 0
    %266 = vmatpush1.bf16.msra.mxu0 %v260
    %267 = vmatprep.subr.bf16.mxu0 0
    %268 = vmatpush1.bf16.msra.mxu0 0
    %269 = vmatprep.subr.bf16.mxu0 0
    %270 = vmatpush1.bf16.msra.mxu0 0
    %271 = vmatprep.subr.bf16.mxu0 0
    %272 = vmatpush1.bf16.msra.mxu0 0
    %273 = vmatprep.subr.bf16.mxu0 0
    %274 = vmatpush1.bf16.msra.mxu0 0
    %275 = vmatprep.subr.bf16.mxu0 0
    %276 = vmatpush1.bf16.msra.mxu0 0
    %277 = vmatprep.subr.bf16.mxu0 0
    %278 = vmatpush1.bf16.msra.mxu0 0
    %279 = vmatprep.subr.bf16.mxu0 0
    %280 = vmatpush1.bf16.msra.mxu0 0
    %281 = vmatprep.subr.bf16.mxu0 0
    %282 = vmatpush1.bf16.msra.mxu0 0
    %283 = vmatprep.subr.bf16.mxu0 0
    %284 = vmatpush1.bf16.msra.mxu0 0
    %285 = vmatprep.subr.bf16.mxu0 0
    %286 = vmatpush1.bf16.msra.mxu0 0
    %287 = vmatprep.subr.bf16.mxu0 0
    %288 = vmatpush1.bf16.msra.mxu0 0
    %289 = vmatprep.subr.bf16.mxu0 0
    %290 = vmatpush1.bf16.msra.mxu0 0
    %291 = vmatprep.subr.bf16.mxu0 0
    %292 = vmatpush1.bf16.msra.mxu0 0
    %293 = vmatprep.subr.bf16.mxu0 0
    %294 = vmatpush1.bf16.msra.mxu0 0
    %295 = vmatprep.subr.bf16.mxu0 0
    %296 = vmatpush1.bf16.msra.mxu0 0
    %297 = vmatprep.mubr.bf16.mxu0 0
    %298 = vmatmul.mubr.bf16.gmra.mrb[0].mxu0 %v263
    %v299 = vpop.f32.mrb[0].mxu0
    %v300 = vadd.f32 0.0, %v299
    %v301 = vpop.f32.mrb[0].mxu0
    %v302 = vpop.f32.mrb[0].mxu0
    %v303 = vpop.f32.mrb[0].mxu0
    %304 = vdwg.mxu0
    %305 = vst.msk [vmem:[#allocation2] sm:$0xff] %vm102, %v254
    %306 = vst.msk [vmem:[#allocation2 + $0x8] sm:$0xff] %vm102, %v300
    %v307 = vsel %vm102, %v209, 0.0
    %v308 = vrot.slane %v307, 4
    %v309 = vadd.f32 %v307, %v308
    %v310 = vrot.slane %v309, 2
    %v311 = vadd.f32 %v309, %v310
    %v312 = vrot.slane %v311, 1
    %v313 = vadd.f32 %v311, %v312
    %v314 = vsel %vm102, %v210, 0.0
    %v315 = vrot.slane %v314, 4
    %v316 = vadd.f32 %v314, %v315
    %v317 = vrot.slane %v316, 2
    %v318 = vadd.f32 %v316, %v317
    %v319 = vrot.slane %v318, 1
    %v320 = vadd.f32 %v318, %v319
    %v321 = vsel %vm102, %v313, 0.0
    %322 = vadd.xlane.f32.xlu0 %v321
    %v323 = vpop.xlane.xlu0 %322
    %v324 = vsel %vm102, %v320, 0.0
    %325 = vadd.xlane.f32.xlu0 %v324
    %v326 = vpop.xlane.xlu0 %325
    %v327 = vrcp.pop 16.0
    %v328 = vmul.f32 %v323, %v327
    %v329 = vmul.f32 %v326, %v327
    %v330 = vrcp.pop %v328
    %v331 = vrcp.pop %v329
    %v332 = vmul.f32 %v313, %v330
    %v333 = vmul.f32 %v320, %v331
    %v334 = vsub.f32 %v332, 1.0
    %v335 = vsub.f32 %v333, 1.0
    %v336 = vsub.f32 %v334, 0.01
    %v337 = vsub.f32 %v335, 0.01
    %v338 = vadd.f32 %v209, 0.001
    %v339 = vadd.f32 %v210, 0.001
    %v340 = vlog2.pop %v338
    %v341 = vmul.f32 %v340, 0.6931472
    %v342 = vlog2.pop %v339
    %v343 = vmul.f32 %v342, 0.6931472
    %v344 = vsel %vm102, %v341, 0.0
    %345 = vadd.xlane.f32.xlu0 %v344
    %v346 = vpop.xlane.xlu0 %345
    %v347 = vsel %vm102, %v343, 0.0
    %348 = vadd.xlane.f32.xlu0 %v347
    %v349 = vpop.xlane.xlu0 %348
    %v350 = vrot.slane %v346, 4
    %v351 = vadd.f32 %v346, %v350
    %v352 = vrot.slane %v351, 2
    %v353 = vadd.f32 %v351, %v352
    %v354 = vrot.slane %v353, 1
    %v355 = vadd.f32 %v353, %v354
    %v356 = vrot.slane %v349, 4
    %v357 = vadd.f32 %v349, %v356
    %v358 = vrot.slane %v357, 2
    %v359 = vadd.f32 %v357, %v358
    %v360 = vrot.slane %v359, 1
    %v361 = vadd.f32 %v359, %v360
    %362 = vst [vmem:[%s4] sm:$0x1] 0.0
    %363 = vst [vmem:[%s4 + $0x1] sm:$0x1] 0.0
    %vm364 = vcmask 57344
    %365 = vst.msk [vmem:[%s4] sm:$0x1] %vm364, %v336
    %366 = vst.msk [vmem:[%s4 + $0x1] sm:$0x1] %vm364, %v337
    %vm367 = vcmask 65600
    %368 = vst.msk [vmem:[%s4] sm:$0x1] %vm367, %v355
    %369 = vst.msk [vmem:[%s4 + $0x1] sm:$0x1] %vm367, %v361
    // Predicated region
    $region14: #{ltm_head_forward.1} parent=1 // pred_check
      _
    $region15: #{ltm_head_forward.1} parent=1 // pred_check_branch
      %371 = sbr.rel (0) target = $region17
    $region16: #{ltm_head_forward.1} parent=1 // pred_region
      %s373 = ssub.s32 256, 256
      %374 = vsyncadd [#allocation3], %s373
      %s375 = sshll.u32 [#allocation2], 4
      %s376 = int_to_ptr.vmem [resolvable:$true] %s375
      %381 = dma.vmem_to_hbm [thread:$0]  %s376, 256, %s3, [#allocation3], 128, 128, 8
    $region17: #{ltm_head_forward.1} parent=1 // pred_fallthru
      _
    // Predicated region
    $region18: #{ltm_head_forward.1} parent=1 // pred_check
      _
    $region19: #{ltm_head_forward.1} parent=1 // pred_check_branch
      %383 = sbr.rel (0) target = $region21
    $region20: #{ltm_head_forward.1} parent=1 // pred_region
      _
    $region21: #{ltm_head_forward.1} parent=1 // pred_fallthru
      _
    // Predicated region
    $region22: #{ltm_head_forward.1} parent=1 // pred_check
      _
    $region23: #{ltm_head_forward.1} parent=1 // pred_check_branch
      %385 = sbr.rel (0) target = $region25
    $region24: #{ltm_head_forward.1} parent=1 // pred_region
      %386 = dma.done [#allocation3], 256
    $region25: #{ltm_head_forward.1} parent=1 // pred_fallthru
      _
    // Predicated region
    $region26: #{ltm_head_forward.1} parent=1 // pred_check
      _
    $region27: #{ltm_head_forward.1} parent=1 // pred_check_branch
      %388 = sbr.rel (0) target = $region29
    $region28: #{ltm_head_forward.1} parent=1 // pred_region
      _
    $region29: #{ltm_head_forward.1} parent=1 // pred_fallthru
      _
    %389 = vsyncpa [#allocation3], 1

</llo_original>
